<compile_context>
chip_gen: v6e
topology: v6e:2x2x1
jax: 0.10.0
libtpu: 0.0.40
codegen_flags: <defaults>
</compile_context>

<pallas_src>
import functools

import jax
import jax.numpy as jnp
from jax import lax
from jax.experimental import pallas as pl
from jax.experimental.pallas import tpu as pltpu

LN_EPS = 1e-5            # PyTorch nn.LayerNorm default
_LANE = 128
_SUBLANE = 8
_VMEM_LIMIT = 32 * 1024 * 1024   # safe scoped limit on v5e / v6e / v7x


def _round_up(x, m):
    return (x + m - 1) // m * m


# ----------------------------------------------------------------------------
# Standalone LayerNorm kernel (generic PreNorm path, arbitrary injected fn).
# ----------------------------------------------------------------------------
def _layernorm_kernel(x_ref, gamma_ref, beta_ref, o_ref, *, d_real):
    x = x_ref[...].astype(jnp.float32)                        # (TR, Dp)
    dp = x.shape[-1]
    lane = lax.broadcasted_iota(jnp.int32, (1, dp), 1)
    mask = (lane < d_real).astype(jnp.float32)                # (1, Dp)
    inv_d = jnp.float32(1.0 / d_real)

    # Padded lanes of x are zero, so the plain sum is already the masked sum.
    mean = jnp.sum(x, axis=-1, keepdims=True) * inv_d
    centered = (x - mean) * mask
    var = jnp.sum(centered * centered, axis=-1, keepdims=True) * inv_d  # biased
    inv = lax.rsqrt(var + LN_EPS)

    y = centered * inv * gamma_ref[...].astype(jnp.float32) \
        + beta_ref[...].astype(jnp.float32)                   # pad lanes -> 0
    o_ref[...] = y.astype(o_ref.dtype)


def layernorm(x, gamma, beta, *, row_tile=256):
    """LayerNorm over the last axis of x (any leading shape)."""
    assert row_tile % _SUBLANE == 0
    orig_shape = x.shape
    d = orig_shape[-1]
    x2 = x.reshape(-1, d)
    rows = x2.shape[0]

    d_p = _round_up(d, _LANE)
    rt = min(row_tile, _round_up(rows, _SUBLANE))
    rows_p = _round_up(rows, rt)

    x_p = jnp.pad(x2, ((0, rows_p - rows), (0, d_p - d)))
    gamma_p = jnp.pad(gamma.reshape(1, d), ((0, 0), (0, d_p - d)))
    beta_p = jnp.pad(beta.reshape(1, d), ((0, 0), (0, d_p - d)))

    out = pl.pallas_call(
        functools.partial(_layernorm_kernel, d_real=d),
        out_shape=jax.ShapeDtypeStruct((rows_p, d_p), x.dtype),
        grid_spec=pltpu.PrefetchScalarGridSpec(
            num_scalar_prefetch=0,
            grid=(rows_p // rt,),
            in_specs=[
                pl.BlockSpec((rt, d_p), lambda i: (i, 0)),
                pl.BlockSpec((1, d_p), lambda i: (0, 0)),
                pl.BlockSpec((1, d_p), lambda i: (0, 0)),
            ],
            out_specs=pl.BlockSpec((rt, d_p), lambda i: (i, 0)),
        ),
        compiler_params=pltpu.CompilerParams(
            dimension_semantics=("parallel",),
            vmem_limit_bytes=_VMEM_LIMIT),
    )(x_p, gamma_p, beta_p)
    return out[:rows, :d].reshape(orig_shape)


# ----------------------------------------------------------------------------
# Generic PreNorm.forward (matches the PyTorch module; `fn` is an arbitrary
# injected callable, so it cannot be fused in general).
# TODO(synk): arbitrary `fn` modules stay outside the kernel by construction.
# ----------------------------------------------------------------------------
def pre_norm_forward(params, fn, x, context=None):
    x_n = layernorm(x, params["ln_x_gamma"], params["ln_x_beta"])
    kwargs = {}
    if context is not None:
        kwargs["context"] = layernorm(
            context, params["ln_c_gamma"], params["ln_c_beta"])
    return fn(x_n, **kwargs)


# ----------------------------------------------------------------------------
# Fused context kernel: per batch, o = mean_tokens(LN(ctx)) @ Wc   -> (1, Dout)
# ----------------------------------------------------------------------------
def _ln_pool_proj_kernel(ctx_ref, gamma_ref, beta_ref, wc_ref, o_ref,
                         *, c_real, m_real):
    ctx = ctx_ref[0].astype(jnp.float32)                      # (Mp, Cp)
    mp, cp = ctx.shape
    lane = lax.broadcasted_iota(jnp.int32, (1, cp), 1)
    lane_mask = (lane < c_real).astype(jnp.float32)
    inv_c = jnp.float32(1.0 / c_real)

    mean = jnp.sum(ctx, axis=-1, keepdims=True) * inv_c
    centered = (ctx - mean) * lane_mask
    var = jnp.sum(centered * centered, axis=-1, keepdims=True) * inv_c
    inv = lax.rsqrt(var + LN_EPS)
    y = centered * inv * gamma_ref[...].astype(jnp.float32) \
        + beta_ref[...].astype(jnp.float32)                   # (Mp, Cp)

    # Padded token rows produce y == beta; mask them out of the pooled mean.
    row = lax.broadcasted_iota(jnp.int32, (mp, 1), 0)
    row_mask = (row < m_real).astype(jnp.float32)
    pooled = jnp.sum(y * row_mask, axis=0, keepdims=True) * jnp.float32(1.0 / m_real)

    o_ref[0] = jnp.dot(pooled, wc_ref[...].astype(jnp.float32),
                       preferred_element_type=jnp.float32).astype(o_ref.dtype)


# ----------------------------------------------------------------------------
# Fused x kernel: o = LN(x) @ Wx + bx + cadd[batch]   (cadd is (1, Dout))
# ----------------------------------------------------------------------------
def _ln_linear_bias_kernel(x_ref, gamma_ref, beta_ref, w_ref, b_ref, cadd_ref,
                           o_ref, *, d_real):
    x = x_ref[0].astype(jnp.float32)                          # (rt, Dp)
    dp = x.shape[-1]
    lane = lax.broadcasted_iota(jnp.int32, (1, dp), 1)
    mask = (lane < d_real).astype(jnp.float32)
    inv_d = jnp.float32(1.0 / d_real)

    mean = jnp.sum(x, axis=-1, keepdims=True) * inv_d
    centered = (x - mean) * mask
    var = jnp.sum(centered * centered, axis=-1, keepdims=True) * inv_d
    inv = lax.rsqrt(var + LN_EPS)
    y = centered * inv * gamma_ref[...].astype(jnp.float32) \
        + beta_ref[...].astype(jnp.float32)                   # pad lanes -> 0

    acc = jnp.dot(y, w_ref[...].astype(jnp.float32),
                  preferred_element_type=jnp.float32)          # (rt, Dout_p)
    acc = acc + b_ref[...].astype(jnp.float32) + cadd_ref[0].astype(jnp.float32)
    o_ref[0] = acc.astype(o_ref.dtype)


# ----------------------------------------------------------------------------
# Fused fast path used in the demo, where fn is the linear map
#   fn(x, context) = x @ Wx + bx + mean_tokens(context @ Wc)
# ----------------------------------------------------------------------------
def pre_norm_linear_forward(params, x, context, w_x, b_x, w_c, *, row_tile=256):
    assert row_tile % _SUBLANE == 0
    B, N, D = x.shape
    _, M, C = context.shape
    d_out = w_x.shape[-1]

    d_in_p = _round_up(D, _LANE)
    d_out_p = _round_up(d_out, _LANE)
    c_p = _round_up(C, _LANE)
    m_p = _round_up(M, _SUBLANE)
    rt = min(row_tile, _round_up(N, _SUBLANE))
    n_p = _round_up(N, rt)

    x_p = jnp.pad(x, ((0, 0), (0, n_p - N), (0, d_in_p - D)))
    gx_p = jnp.pad(params["ln_x_gamma"].reshape(1, D), ((0, 0), (0, d_in_p - D)))
    bxln_p = jnp.pad(params["ln_x_beta"].reshape(1, D), ((0, 0), (0, d_in_p - D)))
    wx_p = jnp.pad(w_x, ((0, d_in_p - D), (0, d_out_p - d_out)))
    bx_p = jnp.pad(b_x.reshape(1, d_out), ((0, 0), (0, d_out_p - d_out)))

    ctx_p = jnp.pad(context, ((0, 0), (0, m_p - M), (0, c_p - C)))
    gc_p = jnp.pad(params["ln_c_gamma"].reshape(1, C), ((0, 0), (0, c_p - C)))
    bc_p = jnp.pad(params["ln_c_beta"].reshape(1, C), ((0, 0), (0, c_p - C)))
    wc_p = jnp.pad(w_c, ((0, c_p - C), (0, d_out_p - d_out)))

    # Kernel A — context: LN + mean-pool + project, one grid step per batch.
    # TODO(synk): for very long context (M >> VMEM), tile M with an accumulator.
    ctx_add = pl.pallas_call(
        functools.partial(_ln_pool_proj_kernel, c_real=C, m_real=M),
        out_shape=jax.ShapeDtypeStruct((B, 1, d_out_p), x.dtype),
        grid_spec=pltpu.PrefetchScalarGridSpec(
            num_scalar_prefetch=0,
            grid=(B,),
            in_specs=[
                pl.BlockSpec((1, m_p, c_p), lambda b: (b, 0, 0)),
                pl.BlockSpec((1, c_p), lambda b: (0, 0)),
                pl.BlockSpec((1, c_p), lambda b: (0, 0)),
                pl.BlockSpec((c_p, d_out_p), lambda b: (0, 0)),
            ],
            out_specs=pl.BlockSpec((1, 1, d_out_p), lambda b: (b, 0, 0)),
        ),
        compiler_params=pltpu.CompilerParams(
            dimension_semantics=("parallel",),
            vmem_limit_bytes=_VMEM_LIMIT),
    )(ctx_p, gc_p, bc_p, wc_p)

    # Kernel B — x path: LN + matmul + bias + per-batch context add, fused.
    # TODO(synk): for large D/d_out (512+), add K/N grid axes with an f32
    # VMEM accumulator instead of keeping the whole weight resident.
    out = pl.pallas_call(
        functools.partial(_ln_linear_bias_kernel, d_real=D),
        out_shape=jax.ShapeDtypeStruct((B, n_p, d_out_p), x.dtype),
        grid_spec=pltpu.PrefetchScalarGridSpec(
            num_scalar_prefetch=0,
            grid=(B, n_p // rt),
            in_specs=[
                pl.BlockSpec((1, rt, d_in_p), lambda b, i: (b, i, 0)),
                pl.BlockSpec((1, d_in_p), lambda b, i: (0, 0)),
                pl.BlockSpec((1, d_in_p), lambda b, i: (0, 0)),
                pl.BlockSpec((d_in_p, d_out_p), lambda b, i: (0, 0)),
                pl.BlockSpec((1, d_out_p), lambda b, i: (0, 0)),
                pl.BlockSpec((1, 1, d_out_p), lambda b, i: (b, 0, 0)),
            ],
            out_specs=pl.BlockSpec((1, rt, d_out_p), lambda b, i: (b, i, 0)),
        ),
        compiler_params=pltpu.CompilerParams(
            dimension_semantics=("parallel", "parallel"),
            vmem_limit_bytes=_VMEM_LIMIT),
    )(x_p, gx_p, bxln_p, wx_p, bx_p, ctx_add)

    return out[:, :N, :d_out]


# Pure-JAX reference for correctness checking.
def _ln_ref(x, g, b):
    m = jnp.mean(x, axis=-1, keepdims=True)
    v = jnp.mean((x - m) ** 2, axis=-1, keepdims=True)
    return (x - m) / jnp.sqrt(v + LN_EPS) * g + b


if __name__ == "__main__":
    key = jax.random.PRNGKey(0)
    B, N, D = 2, 8, 32        # x tokens / feature dim
    M, C = 8, 16              # context tokens / context dim

    k = iter(jax.random.split(key, 10))
    x = jax.random.normal(next(k), (B, N, D), dtype=jnp.float32)
    context = jax.random.normal(next(k), (B, M, C), dtype=jnp.float32)

    params = {
        "ln_x_gamma": jnp.ones((D,), jnp.float32),
        "ln_x_beta": jnp.zeros((D,), jnp.float32),
        "ln_c_gamma": jnp.ones((C,), jnp.float32),
        "ln_c_beta": jnp.zeros((C,), jnp.float32),
    }
    w_x = jax.random.normal(next(k), (D, D), jnp.float32) * 0.05
    b_x = jax.random.normal(next(k), (D,), jnp.float32) * 0.05
    w_c = jax.random.normal(next(k), (C, D), jnp.float32) * 0.05

    # Fused fast path (both kernels).
    out = pre_norm_linear_forward(params, x, context, w_x, b_x, w_c)
    out = jax.block_until_ready(out)

    # Generic PreNorm path (standalone LayerNorm kernels + injected fn).
    def fn(x_n, context):
        return x_n @ w_x + b_x + jnp.mean(context @ w_c, axis=1, keepdims=True)
    out_generic = jax.block_until_ready(
        pre_norm_forward(params, fn, x, context=context))

    # Pure-JAX reference of the identical computation.
    x_r = _ln_ref(x, params["ln_x_gamma"], params["ln_x_beta"])
    c_r = _ln_ref(context, params["ln_c_gamma"], params["ln_c_beta"])
    ref = x_r @ w_x + b_x + jnp.mean(c_r @ w_c, axis=1, keepdims=True)

    assert out.shape == (B, N, D)
    assert jnp.allclose(out, ref, atol=2e-4, rtol=2e-4), (
        float(jnp.max(jnp.abs(out - ref))))
    assert jnp.allclose(out_generic, ref, atol=2e-4, rtol=2e-4), (
        float(jnp.max(jnp.abs(out_generic - ref))))

    print("KERNEL_OK")
</pallas_src>

<mosaic_0001>
module attributes {stable_mosaic.version = 11 : i64} {
  func.func @_ln_pool_proj_kernel(%arg0: i32, %arg1: memref<1x8x128xf32, #tpu.memory_space<vmem>>, %arg2: memref<1x128xf32, #tpu.memory_space<vmem>>, %arg3: memref<1x128xf32, #tpu.memory_space<vmem>>, %arg4: memref<128x128xf32, #tpu.memory_space<vmem>>, %arg5: memref<1x1x128xf32, #tpu.memory_space<vmem>>) attributes {dimension_semantics = [#tpu.dimension_semantics<parallel>], iteration_bounds = array<i64: 2>, scalar_prefetch = 0 : i64, scratch_operands = 0 : i64, tpu.core_type = #tpu.core_type<tc>, window_params = [{transform_indices = @transform_0, window_bounds = array<i64: 1, 8, 128>}, {pipeline_mode = #tpu.pipeline_mode<synchronous>, transform_indices = @transform_1, window_bounds = array<i64: 1, 128>}, {pipeline_mode = #tpu.pipeline_mode<synchronous>, transform_indices = @transform_2, window_bounds = array<i64: 1, 128>}, {pipeline_mode = #tpu.pipeline_mode<synchronous>, transform_indices = @transform_3, window_bounds = array<i64: 128, 128>}, {transform_indices = @transform_4, window_bounds = array<i64: 1, 1, 128>}]} {
    %c0 = arith.constant 0 : index
    %c0_0 = arith.constant 0 : index
    %c0_1 = arith.constant 0 : index
    %0 = vector.load %arg1[%c0, %c0_0, %c0_1] : memref<1x8x128xf32, #tpu.memory_space<vmem>>, vector<1x8x128xf32>
    %1 = vector.shape_cast %0 : vector<1x8x128xf32> to vector<8x128xf32>
    %2 = tpu.iota {dimensions = array<i32: 1>} : vector<1x128xi32>
    %c16_i32 = arith.constant 16 : i32
    %3 = vector.broadcast %c16_i32 : i32 to vector<1x128xi32>
    %4 = arith.cmpi slt, %2, %3 : vector<1x128xi32>
    %5 = arith.extui %4 : vector<1x128xi1> to vector<1x128xi32>
    %6 = arith.sitofp %5 : vector<1x128xi32> to vector<1x128xf32>
    %cst = arith.constant dense<0.000000e+00> : vector<8xf32>
    %7 = vector.multi_reduction <add>, %1, %cst [1] : vector<8x128xf32> to vector<8xf32>
    %8 = vector.shape_cast %7 : vector<8xf32> to vector<8x1xf32>
    %cst_2 = arith.constant 6.250000e-02 : f32
    %9 = vector.broadcast %cst_2 : f32 to vector<8x1xf32>
    %10 = arith.mulf %8, %9 : vector<8x1xf32>
    %11 = vector.broadcast %10 : vector<8x1xf32> to vector<8x128xf32>
    %12 = arith.subf %1, %11 : vector<8x128xf32>
    %13 = vector.broadcast %6 : vector<1x128xf32> to vector<8x128xf32>
    %14 = arith.mulf %12, %13 : vector<8x128xf32>
    %15 = arith.mulf %14, %14 : vector<8x128xf32>
    %cst_3 = arith.constant dense<0.000000e+00> : vector<8xf32>
    %16 = vector.multi_reduction <add>, %15, %cst_3 [1] : vector<8x128xf32> to vector<8xf32>
    %17 = vector.shape_cast %16 : vector<8xf32> to vector<8x1xf32>
    %cst_4 = arith.constant 6.250000e-02 : f32
    %18 = vector.broadcast %cst_4 : f32 to vector<8x1xf32>
    %19 = arith.mulf %17, %18 : vector<8x1xf32>
    %cst_5 = arith.constant 9.99999974E-6 : f32
    %20 = vector.broadcast %cst_5 : f32 to vector<8x1xf32>
    %21 = arith.addf %19, %20 : vector<8x1xf32>
    %22 = math.rsqrt %21 : vector<8x1xf32>
    %23 = vector.broadcast %22 : vector<8x1xf32> to vector<8x128xf32>
    %24 = arith.mulf %14, %23 : vector<8x128xf32>
    %c0_6 = arith.constant 0 : index
    %c0_7 = arith.constant 0 : index
    %25 = vector.load %arg2[%c0_6, %c0_7] : memref<1x128xf32, #tpu.memory_space<vmem>>, vector<1x128xf32>
    %26 = vector.broadcast %25 : vector<1x128xf32> to vector<8x128xf32>
    %27 = arith.mulf %24, %26 : vector<8x128xf32>
    %c0_8 = arith.constant 0 : index
    %c0_9 = arith.constant 0 : index
    %28 = vector.load %arg3[%c0_8, %c0_9] : memref<1x128xf32, #tpu.memory_space<vmem>>, vector<1x128xf32>
    %29 = vector.broadcast %28 : vector<1x128xf32> to vector<8x128xf32>
    %30 = arith.addf %27, %29 : vector<8x128xf32>
    %31 = tpu.iota {dimensions = array<i32: 0>} : vector<8x1xi32>
    %c8_i32 = arith.constant 8 : i32
    %32 = vector.broadcast %c8_i32 : i32 to vector<8x1xi32>
    %33 = arith.cmpi slt, %31, %32 : vector<8x1xi32>
    %34 = arith.extui %33 : vector<8x1xi1> to vector<8x1xi32>
    %35 = arith.sitofp %34 : vector<8x1xi32> to vector<8x1xf32>
    %36 = vector.broadcast %35 : vector<8x1xf32> to vector<8x128xf32>
    %37 = arith.mulf %30, %36 : vector<8x128xf32>
    %cst_10 = arith.constant dense<0.000000e+00> : vector<128xf32>
    %38 = vector.multi_reduction <add>, %37, %cst_10 [0] : vector<8x128xf32> to vector<128xf32>
    %39 = vector.shape_cast %38 : vector<128xf32> to vector<1x128xf32>
    %cst_11 = arith.constant 1.250000e-01 : f32
    %40 = vector.broadcast %cst_11 : f32 to vector<1x128xf32>
    %41 = arith.mulf %39, %40 : vector<1x128xf32>
    %c0_12 = arith.constant 0 : index
    %c0_13 = arith.constant 0 : index
    %42 = vector.load %arg4[%c0_12, %c0_13] : memref<128x128xf32, #tpu.memory_space<vmem>>, vector<128x128xf32>
    %cst_14 = arith.constant dense<0.000000e+00> : vector<1x128xf32>
    %43 = tpu.matmul %41, %42, %cst_14 {dimension_numbers = #tpu.dot_dimension_numbers<[1], [0], [0], [1], [0, 0, 1, 1], [], []>} : vector<1x128xf32>, vector<128x128xf32>, vector<1x128xf32> -> vector<1x128xf32>
    %c0_15 = arith.constant 0 : index
    %c0_16 = arith.constant 0 : index
    %c0_17 = arith.constant 0 : index
    %44 = vector.load %arg5[%c0_15, %c0_16, %c0_17] : memref<1x1x128xf32, #tpu.memory_space<vmem>>, vector<1x1x128xf32>
    %45 = vector.shape_cast %44 : vector<1x1x128xf32> to vector<1x128xf32>
    %46 = vector.shape_cast %43 : vector<1x128xf32> to vector<1x1x128xf32>
    tpu.vector_store %arg5[%c0_15, %c0_16, %c0_17], %46 {strides = array<i32>} : memref<1x1x128xf32, #tpu.memory_space<vmem>>, vector<1x1x128xf32>,
    return
  }
  func.func @transform_0(%arg0: i32) -> (i32, i32, i32) {
    %c0_i32 = arith.constant 0 : i32
    %c0_i32_0 = arith.constant 0 : i32
    %c0_i32_1 = arith.constant 0 : i32
    return %arg0, %c0_i32, %c0_i32_0 : i32, i32, i32
  }
  func.func @transform_1(%arg0: i32) -> (i32, i32) {
    %c0_i32 = arith.constant 0 : i32
    %c0_i32_0 = arith.constant 0 : i32
    %c0_i32_1 = arith.constant 0 : i32
    return %c0_i32, %c0_i32_0 : i32, i32
  }
  func.func @transform_2(%arg0: i32) -> (i32, i32) {
    %c0_i32 = arith.constant 0 : i32
    %c0_i32_0 = arith.constant 0 : i32
    %c0_i32_1 = arith.constant 0 : i32
    return %c0_i32, %c0_i32_0 : i32, i32
  }
  func.func @transform_3(%arg0: i32) -> (i32, i32) {
    %c0_i32 = arith.constant 0 : i32
    %c0_i32_0 = arith.constant 0 : i32
    %c0_i32_1 = arith.constant 0 : i32
    return %c0_i32, %c0_i32_0 : i32, i32
  }
  func.func @transform_4(%arg0: i32) -> (i32, i32, i32) {
    %c0_i32 = arith.constant 0 : i32
    %c0_i32_0 = arith.constant 0 : i32
    %c0_i32_1 = arith.constant 0 : i32
    return %arg0, %c0_i32, %c0_i32_0 : i32, i32, i32
  }
}

</mosaic_0001>

<llo_original>
// kernel: tpu_custom_call.1
$region0: #{tpu_custom_call.1}
  #allocation0 [shape = 'u32[]', space=smem, size = 0x4, offset = 0x4, fixed_abs, tag = 'smem constant byte address 0x4 - core index']
  #allocation1 [shape = 'u32[144,128]{1,0:T(1,128)}', space=vmem, size = 0x12000, scoped, tag = 'internal scratch']
  %s0 = inlined_call_operand.hbm [shape: f32[2,8,128], index: 0, kind: input, shape index: {}]
  %s1 = inlined_call_operand.vmem [shape: f32[1,128], index: 1, kind: input, shape index: {}]
  %s2 = inlined_call_operand.vmem [shape: f32[1,128], index: 2, kind: input, shape index: {}]
  %s3 = inlined_call_operand.hbm [shape: f32[128,128], index: 3, kind: input, shape index: {}]
  %s4 = inlined_call_operand.hbm [shape: f32[2,1,128], index: 4, kind: output, shape index: {}]
  %s5 = sld [smem:[#allocation0]]
  $region57: #{tpu_custom_call.1} parent=0
    _
  %s7 = ssub.s32 1, %s5
  %s8 = scalar_select 0, %s7, %s5
  $region1: #{tpu_custom_call.1} parent=0
    #allocation2 [shape = 'u8[8192]{0}', space=vmem, size = 0x2000, scoped, tag = 'input window, operand 0']
    #allocation3 [shape = 's32[2]{0}', space=sflag, size = 0x8, scoped, tag = 'scoped memory for tpu_custom_call.1']
    #allocation4 [shape = 's32[2]{0}', space=sflag, size = 0x8, scoped, tag = 'scoped memory for tpu_custom_call.1']
    #allocation5 [shape = 'u8[65536]{0}', space=vmem, size = 0x10000, scoped, tag = 'input window, operand 3, single buffered']
    #allocation6 [shape = 's32[1]{0}', space=sflag, size = 0x4, scoped, tag = 'scoped memory for tpu_custom_call.1']
    #allocation7 [shape = 'u8[1024]{0}', space=vmem, size = 0x400, scoped, tag = 'output window, operand 0']
    %9 = vsyncpa [#allocation3], 0
    %s10 = scalar_lea.sflag [#allocation3], 1
    %11 = vsyncpa %s10, 0
    %12 = vsyncpa [#allocation6], 0
    %13 = vsyncpa [#allocation4], 0
    %s14 = scalar_lea.sflag [#allocation4], 1
    %15 = vsyncpa %s14, 0
    loop: start=0, step=1, limit=4
    $region2: #{tpu_custom_call.1} parent=1 // loop_pre_header
      _
    $region3: #{tpu_custom_call.1} parent=1 // loop_header
      %s17 = sphi 0, %s21
      %p18 = scmp.ge.s32.totalorder %s17, 4
      %s27 = sphi 0, %s29
      %s30 = sphi 0, %s27
      %s31 = sphi 0, %s30
      %s47 = sphi 0, %s31
      %s51 = sphi 0, %s51
      %s53 = sphi 0, %s51
      %s54 = sphi 0, %s53
      %s68 = sphi 0, %s54
      %s72 = sphi 0, %s72
      %s74 = sphi 0, %s72
      %s75 = sphi 0, %s74
      %s89 = sphi 0, %s75
      %s93 = sphi 0, %s93
      %s95 = sphi 0, %s93
      %s96 = sphi 0, %s95
      %s110 = sphi 0, %s96
      %s116 = sphi 0, %s118
      %s119 = sphi 0, %s116
      %s120 = sphi 0, %s119
      %s136 = sphi 0, %s120
    $region4: #{tpu_custom_call.1} parent=1 // loop_header_branch
      %20 = sbr.rel (%p18) target = $region8
    $region5: #{tpu_custom_call.1} parent=1 // loop_body
      %s22 = ssub.s32 %s17, 1
      %s23 = ssub.s32 %s17, 2
      %s24 = sadd.s32 %s17, 1
      %s25 = ssub.s32 %s17, %s24
      %p26 = scmp.eq.s32.totalorder %s25, 0
      %s28 = sadd.s32 %s27, 1
      %s29 = scalar_select %p26, %s27, %s28
      %p32 = pneg %p26
      %p33 = scmp.eq.s32.totalorder %s17, 1
      %p34 = por %p32, %p33
      %p35 = scmp.ne.s32.totalorder %s27, %s30
      %p36 = scmp.eq.s32.totalorder %s17, 0
      %p37 = por %p35, %p36
      %p38 = scmp.ne.s32.totalorder %s27, %s30
      %p39 = scmp.eq.s32.totalorder %s22, 1
      %p40 = por %p38, %p39
      %p41 = scmp.ne.s32.totalorder %s30, %s31
      %p42 = scmp.eq.s32.totalorder %s22, 0
      %p43 = por %p41, %p42
      %p44 = scmp.ne.s32.totalorder %s30, %s31
      %p45 = scmp.eq.s32.totalorder %s23, 1
      %p46 = por %p44, %p45
      %p48 = scmp.ne.s32.totalorder %s31, %s47
      %p49 = scmp.eq.s32.totalorder %s23, 0
      %p50 = por %p48, %p49
      %s52 = sadd.s32 %s51, 1
      %p55 = scmp.eq.s32.totalorder %s17, 1
      %p56 = scmp.ne.s32.totalorder %s51, %s53
      %p57 = scmp.eq.s32.totalorder %s17, 0
      %p58 = por %p56, %p57
      %p59 = scmp.ne.s32.totalorder %s51, %s53
      %p60 = scmp.eq.s32.totalorder %s22, 1
      %p61 = por %p59, %p60
      %p62 = scmp.ne.s32.totalorder %s53, %s54
      %p63 = scmp.eq.s32.totalorder %s22, 0
      %p64 = por %p62, %p63
      %p65 = scmp.ne.s32.totalorder %s53, %s54
      %p66 = scmp.eq.s32.totalorder %s23, 1
      %p67 = por %p65, %p66
      %p69 = scmp.ne.s32.totalorder %s54, %s68
      %p70 = scmp.eq.s32.totalorder %s23, 0
      %p71 = por %p69, %p70
      %s73 = sadd.s32 %s72, 1
      %p76 = scmp.eq.s32.totalorder %s17, 1
      %p77 = scmp.ne.s32.totalorder %s72, %s74
      %p78 = scmp.eq.s32.totalorder %s17, 0
      %p79 = por %p77, %p78
      %p80 = scmp.ne.s32.totalorder %s72, %s74
      %p81 = scmp.eq.s32.totalorder %s22, 1
      %p82 = por %p80, %p81
      %p83 = scmp.ne.s32.totalorder %s74, %s75
      %p84 = scmp.eq.s32.totalorder %s22, 0
      %p85 = por %p83, %p84
      %p86 = scmp.ne.s32.totalorder %s74, %s75
      %p87 = scmp.eq.s32.totalorder %s23, 1
      %p88 = por %p86, %p87
      %p90 = scmp.ne.s32.totalorder %s75, %s89
      %p91 = scmp.eq.s32.totalorder %s23, 0
      %p92 = por %p90, %p91
      %s94 = sadd.s32 %s93, 1
      %p97 = scmp.eq.s32.totalorder %s17, 1
      %p98 = scmp.ne.s32.totalorder %s93, %s95
      %p99 = scmp.eq.s32.totalorder %s17, 0
      %p100 = por %p98, %p99
      %p101 = scmp.ne.s32.totalorder %s93, %s95
      %p102 = scmp.eq.s32.totalorder %s22, 1
      %p103 = por %p101, %p102
      %p104 = scmp.ne.s32.totalorder %s95, %s96
      %p105 = scmp.eq.s32.totalorder %s22, 0
      %p106 = por %p104, %p105
      %p107 = scmp.ne.s32.totalorder %s95, %s96
      %p108 = scmp.eq.s32.totalorder %s23, 1
      %p109 = por %p107, %p108
      %p111 = scmp.ne.s32.totalorder %s96, %s110
      %p112 = scmp.eq.s32.totalorder %s23, 0
      %p113 = por %p111, %p112
      %s114 = ssub.s32 %s17, %s24
      %p115 = scmp.eq.s32.totalorder %s114, 0
      %s117 = sadd.s32 %s116, 1
      %s118 = scalar_select %p115, %s116, %s117
      %p121 = pneg %p115
      %p122 = scmp.eq.s32.totalorder %s17, 1
      %p123 = por %p121, %p122
      %p124 = scmp.ne.s32.totalorder %s116, %s119
      %p125 = scmp.eq.s32.totalorder %s17, 0
      %p126 = por %p124, %p125
      %p127 = scmp.ne.s32.totalorder %s116, %s119
      %p128 = scmp.eq.s32.totalorder %s22, 1
      %p129 = por %p127, %p128
      %p130 = scmp.ne.s32.totalorder %s119, %s120
      %p131 = scmp.eq.s32.totalorder %s22, 0
      %p132 = por %p130, %p131
      %p133 = scmp.ne.s32.totalorder %s119, %s120
      %p134 = scmp.eq.s32.totalorder %s23, 1
      %p135 = por %p133, %p134
      %p137 = scmp.ne.s32.totalorder %s120, %s136
      %p138 = scmp.eq.s32.totalorder %s23, 0
      %p139 = por %p137, %p138
      %p140 = scmp.le.s32.totalorder 1, %s17
      %p141 = scmp.lt.s32.totalorder %s17, 3
      %p142 = pnand %p140, %p141
      %p143 = pneg %p142
      // Predicated region
      $region9: #{tpu_custom_call.1} parent=5 // pred_check
        _
      $region10: #{tpu_custom_call.1} parent=5 // pred_check_branch
        %145 = sbr.rel (%p142) target = $region12
      $region11: #{tpu_custom_call.1} parent=5 // pred_region
        %s146 = ssub.s32 %s17, 1
        // Predicated region
        $region13: #{tpu_custom_call.1} parent=11 // pred_check
          %p147 = pneg %p64
        $region14: #{tpu_custom_call.1} parent=11 // pred_check_branch
          %149 = sbr.rel (%p147) target = $region16
        $region15: #{tpu_custom_call.1} parent=11 // pred_region
          _
        $region16: #{tpu_custom_call.1} parent=11 // pred_fallthru
          _
        // Predicated region
        $region17: #{tpu_custom_call.1} parent=11 // pred_check
          %p150 = pneg %p85
        $region18: #{tpu_custom_call.1} parent=11 // pred_check_branch
          %152 = sbr.rel (%p150) target = $region20
        $region19: #{tpu_custom_call.1} parent=11 // pred_region
          _
        $region20: #{tpu_custom_call.1} parent=11 // pred_fallthru
          _
        // Predicated region
        $region21: #{tpu_custom_call.1} parent=11 // pred_check
          %p153 = pneg %p106
        $region22: #{tpu_custom_call.1} parent=11 // pred_check_branch
          %155 = sbr.rel (%p153) target = $region24
        $region23: #{tpu_custom_call.1} parent=11 // pred_region
          %s157 = ssub.s32 2048, 2048
          %158 = vsyncadd [#allocation6], %s157
          %s159 = sshll.u32 [#allocation5], 4
          %s160 = int_to_ptr.vmem [resolvable:$true] %s159
          %165 = dma.hbm_to_vmem [thread:$0]  %s3, 2048, %s160, [#allocation6], 128, 128, 8
        $region24: #{tpu_custom_call.1} parent=11 // pred_fallthru
          _
      $region12: #{tpu_custom_call.1} parent=5 // pred_fallthru
        _
      %p166 = scmp.lt.s32.totalorder %s17, 2
      // Predicated region
      $region25: #{tpu_custom_call.1} parent=5 // pred_check
        %p167 = pneg %p166
      $region26: #{tpu_custom_call.1} parent=5 // pred_check_branch
        %169 = sbr.rel (%p167) target = $region28
      $region27: #{tpu_custom_call.1} parent=5 // pred_region
        // Predicated region
        $region29: #{tpu_custom_call.1} parent=27 // pred_check
          %p170 = pneg %p37
        $region30: #{tpu_custom_call.1} parent=27 // pred_check_branch
          %172 = sbr.rel (%p170) target = $region32
        $region31: #{tpu_custom_call.1} parent=27 // pred_region
          %s173 = sand.u32 %s27, 1
          %s174 = scalar_lea.sflag [#allocation3], %s173
          %s175 = sand.u32 %s27, 1
          %s176 = smul.addr %s175, 8
          %s177 = scalar_lea.vmem [#allocation2], %s176
          %s179 = ssub.s32 128, 128
          %180 = vsyncadd %s174, %s179
          %s181 = smul.addr %s17, 128
          %s182 = scalar_lea.hbm %s0, %s181
          %s184 = sshll.u32 %s177, 4
          %s185 = int_to_ptr.vmem [resolvable:$true] %s184
          %187 = dma.hbm_to_vmem [thread:$0]  %s182, 128, %s185, %s174
        $region32: #{tpu_custom_call.1} parent=27 // pred_fallthru
          _
      $region28: #{tpu_custom_call.1} parent=5 // pred_fallthru
        _
      %p188 = scmp.le.s32.totalorder 1, %s17
      %p189 = scmp.lt.s32.totalorder %s17, 3
      %p190 = pnand %p188, %p189
      %p191 = pneg %p190
      // Predicated region
      $region33: #{tpu_custom_call.1} parent=5 // pred_check
        _
      $region34: #{tpu_custom_call.1} parent=5 // pred_check_branch
        %193 = sbr.rel (%p190) target = $region36
      $region35: #{tpu_custom_call.1} parent=5 // pred_region
        %s194 = ssub.s32 %s17, 1
        %s195 = sand.u32 %s30, 1
        %s196 = scalar_lea.sflag [#allocation3], %s195
        %s197 = sand.u32 %s30, 1
        %s198 = smul.addr %s197, 8
        %s199 = scalar_lea.vmem [#allocation2], %s198
        // Predicated region
        $region37: #{tpu_custom_call.1} parent=35 // pred_check
          %p200 = pneg %p43
        $region38: #{tpu_custom_call.1} parent=35 // pred_check_branch
          %202 = sbr.rel (%p200) target = $region40
        $region39: #{tpu_custom_call.1} parent=35 // pred_region
          %203 = dma.done %s196, 128
        $region40: #{tpu_custom_call.1} parent=35 // pred_fallthru
          _
        // Predicated region
        $region41: #{tpu_custom_call.1} parent=35 // pred_check
          %p204 = pneg %p106
        $region42: #{tpu_custom_call.1} parent=35 // pred_check_branch
          %206 = sbr.rel (%p204) target = $region44
        $region43: #{tpu_custom_call.1} parent=35 // pred_region
          %207 = dma.done [#allocation6], 2048
        $region44: #{tpu_custom_call.1} parent=35 // pred_fallthru
          _
        %s208 = sand.u32 %s30, 1
        %s209 = scalar_lea.sflag [#allocation3], %s208
        %s210 = sand.u32 %s30, 1
        %s211 = smul.addr %s210, 8
        %s212 = scalar_lea.vmem [#allocation2], %s211
        %p213 = pneg %p43
        %p214 = pneg %p40
        %p215 = pneg %p64
        %p216 = pneg %p61
        %p217 = pneg %p85
        %p218 = pneg %p82
        %p219 = pneg %p106
        %p220 = pneg %p103
        %p221 = pneg %p132
        %p222 = pneg %p129
        %s223 = sand.u32 %s119, 1
        %s224 = scalar_lea.sflag [#allocation4], %s223
        %s225 = sand.u32 %s119, 1
        %s226 = scalar_lea.vmem [#allocation7], %s225
        %v227 = vld [vmem:[%s199] sm:$0xff]
        %v228 = vlaneseq
        %v229 = vand.u32 %v228, 127
        %vm230 = vcmp.lt.s32.totalorder %v229, 16
        %v231 = vsel %vm230, 1, 0
        %v232 = vcvt.s32.f32 %v231
        %233 = vadd.xlane.f32.xlu0 %v227
        %v234 = vpop.xlane.xlu0 %233
        %v235 = vmul.f32 %v234, 0.0625
        %v236 = vsub.f32 %v227, %v235
        %v237 = vmul.f32 %v236, %v232
        %v238 = vmul.f32 %v237, %v237
        %239 = vadd.xlane.f32.xlu0 %v238
        %v240 = vpop.xlane.xlu0 %239
        %v241 = vmul.f32 %v240, 0.0625
        %v242 = vadd.f32 %v241, 1e-05
        %v243 = vrsqrt.pop %v242
        %v244 = vmul.f32 %v237, %v243
        %v245 = vld [vmem:[%s1] sm:$0x1]
        %v247 = vlaneseq
        %v248 = vshrl.u32 %v247, 7
        %v249 = vsub.s32 0, %v248
        %v250 = vrot.slane %v245, %v249
        %v252 = vmul.f32 %v244, %v250
        %v253 = vld [vmem:[%s2] sm:$0x1]
        %v255 = vlaneseq
        %v256 = vshrl.u32 %v255, 7
        %v257 = vsub.s32 0, %v256
        %v258 = vrot.slane %v253, %v257
        %v260 = vadd.f32 %v252, %v258
        %v261 = vlaneseq
        %v262 = vshrl.u32 %v261, 7
        %vm263 = vcmp.lt.s32.totalorder %v262, 8
        %v264 = vsel %vm263, 1, 0
        %v265 = vcvt.s32.f32 %v264
        %v266 = vmul.f32 %v260, %v265
        %v267 = vrot.slane %v266, 4
        %v268 = vadd.f32 %v266, %v267
        %v269 = vrot.slane %v268, 2
        %v270 = vadd.f32 %v268, %v269
        %v271 = vrot.slane %v270, 1
        %v272 = vadd.f32 %v270, %v271
        %v273 = vmul.f32 %v272, 0.125
        %v274 = vld [vmem:[#allocation5] sm:$0xff]
        %v275 = vld [vmem:[#allocation5 + $0x8] sm:$0xff]
        %v276 = vld [vmem:[#allocation5 + $0x10] sm:$0xff]
        %v277 = vld [vmem:[#allocation5 + $0x18] sm:$0xff]
        %v278 = vld [vmem:[#allocation5 + $0x20] sm:$0xff]
        %v279 = vld [vmem:[#allocation5 + $0x28] sm:$0xff]
        %v280 = vld [vmem:[#allocation5 + $0x30] sm:$0xff]
        %v281 = vld [vmem:[#allocation5 + $0x38] sm:$0xff]
        %v282 = vld [vmem:[#allocation5 + $0x40] sm:$0xff]
        %v283 = vld [vmem:[#allocation5 + $0x48] sm:$0xff]
        %v284 = vld [vmem:[#allocation5 + $0x50] sm:$0xff]
        %v285 = vld [vmem:[#allocation5 + $0x58] sm:$0xff]
        %v286 = vld [vmem:[#allocation5 + $0x60] sm:$0xff]
        %v287 = vld [vmem:[#allocation5 + $0x68] sm:$0xff]
        %v288 = vld [vmem:[#allocation5 + $0x70] sm:$0xff]
        %v289 = vld [vmem:[#allocation5 + $0x78] sm:$0xff]
        %290 = vmatprep.subr.mxu0 0.0
        %291 = vmatpush1.msra.mxu0 %v289
        %292 = vmatprep.subr.mxu0 0.0
        %293 = vmatpush1.msra.mxu0 %v288
        %294 = vmatprep.subr.mxu0 0.0
        %295 = vmatpush1.msra.mxu0 %v287
        %296 = vmatprep.subr.mxu0 0.0
        %297 = vmatpush1.msra.mxu0 %v286
        %298 = vmatprep.subr.mxu0 0.0
        %299 = vmatpush1.msra.mxu0 %v285
        %300 = vmatprep.subr.mxu0 0.0
        %301 = vmatpush1.msra.mxu0 %v284
        %302 = vmatprep.subr.mxu0 0.0
        %303 = vmatpush1.msra.mxu0 %v283
        %304 = vmatprep.subr.mxu0 0.0
        %305 = vmatpush1.msra.mxu0 %v282
        %306 = vmatprep.subr.mxu0 0.0
        %307 = vmatpush1.msra.mxu0 %v281
        %308 = vmatprep.subr.mxu0 0.0
        %309 = vmatpush1.msra.mxu0 %v280
        %310 = vmatprep.subr.mxu0 0.0
        %311 = vmatpush1.msra.mxu0 %v279
        %312 = vmatprep.subr.mxu0 0.0
        %313 = vmatpush1.msra.mxu0 %v278
        %314 = vmatprep.subr.mxu0 0.0
        %315 = vmatpush1.msra.mxu0 %v277
        %316 = vmatprep.subr.mxu0 0.0
        %317 = vmatpush1.msra.mxu0 %v276
        %318 = vmatprep.subr.mxu0 0.0
        %319 = vmatpush1.msra.mxu0 %v275
        %320 = vmatprep.subr.mxu0 0.0
        %321 = vmatpush1.msra.mxu0 %v274
        %322 = vmatprep.subr.mxu0 0.0
        %323 = vmatpush2.msra.mxu0 0.0
        %324 = vmatprep.subr.mxu0 0.0
        %325 = vmatpush2.msra.mxu0 0.0
        %326 = vmatprep.subr.mxu0 0.0
        %327 = vmatpush2.msra.mxu0 0.0
        %328 = vmatprep.subr.mxu0 0.0
        %329 = vmatpush2.msra.mxu0 0.0
        %330 = vmatprep.subr.mxu0 0.0
        %331 = vmatpush2.msra.mxu0 0.0
        %332 = vmatprep.subr.mxu0 0.0
        %333 = vmatpush2.msra.mxu0 0.0
        %334 = vmatprep.subr.mxu0 0.0
        %335 = vmatpush2.msra.mxu0 0.0
        %336 = vmatprep.subr.mxu0 0.0
        %337 = vmatpush2.msra.mxu0 0.0
        %338 = vmatprep.subr.mxu0 0.0
        %339 = vmatpush2.msra.mxu0 0.0
        %340 = vmatprep.subr.mxu0 0.0
        %341 = vmatpush2.msra.mxu0 0.0
        %342 = vmatprep.subr.mxu0 0.0
        %343 = vmatpush2.msra.mxu0 0.0
        %344 = vmatprep.subr.mxu0 0.0
        %345 = vmatpush2.msra.mxu0 0.0
        %346 = vmatprep.subr.mxu0 0.0
        %347 = vmatpush2.msra.mxu0 0.0
        %348 = vmatprep.subr.mxu0 0.0
        %349 = vmatpush2.msra.mxu0 0.0
        %350 = vmatprep.subr.mxu0 0.0
        %351 = vmatpush2.msra.mxu0 0.0
        %352 = vmatprep.subr.mxu0 0.0
        %353 = vmatpush2.msra.mxu0 0.0
        %354 = vmatprep.mubr.f32.mxu0 0.0
        %355 = vmatmul.mubr.f32.gmra.mxu0 %v273
        %v356 = vpop.f32.mrf.mxu0
        %v357 = vadd.f32 0.0, %v356
        %v358 = vpop.f32.mrf.mxu0
        %359 = vdwg.mxu0
        %360 = vst [vmem:[%s226] sm:$0x1] %v357
        %s361 = sand.u32 %s119, 1
        %s362 = scalar_lea.sflag [#allocation4], %s361
        %s363 = sand.u32 %s119, 1
        %s364 = scalar_lea.vmem [#allocation7], %s363
        // Predicated region
        $region45: #{tpu_custom_call.1} parent=35 // pred_check
          %p365 = pneg %p129
        $region46: #{tpu_custom_call.1} parent=35 // pred_check_branch
          %367 = sbr.rel (%p365) target = $region48
        $region47: #{tpu_custom_call.1} parent=35 // pred_region
          %s369 = ssub.s32 16, 16
          %370 = vsyncadd %s362, %s369
          %s371 = smul.addr %s22, 16
          %s372 = scalar_lea.hbm %s4, %s371
          %s374 = sshll.u32 %s364, 4
          %s375 = int_to_ptr.vmem [resolvable:$true] %s374
          %377 = dma.vmem_to_hbm [thread:$0]  %s375, 16, %s372, %s362
        $region48: #{tpu_custom_call.1} parent=35 // pred_fallthru
          _
      $region36: #{tpu_custom_call.1} parent=5 // pred_fallthru
        _
      %p378 = scmp.le.s32.totalorder 2, %s17
      // Predicated region
      $region49: #{tpu_custom_call.1} parent=5 // pred_check
        %p379 = pneg %p378
      $region50: #{tpu_custom_call.1} parent=5 // pred_check_branch
        %381 = sbr.rel (%p379) target = $region52
      $region51: #{tpu_custom_call.1} parent=5 // pred_region
        %s382 = ssub.s32 %s17, 2
        // Predicated region
        $region53: #{tpu_custom_call.1} parent=51 // pred_check
          %p383 = pneg %p135
        $region54: #{tpu_custom_call.1} parent=51 // pred_check_branch
          %385 = sbr.rel (%p383) target = $region56
        $region55: #{tpu_custom_call.1} parent=51 // pred_region
          %s386 = sand.u32 %s120, 1
          %s387 = scalar_lea.sflag [#allocation4], %s386
          %s388 = sand.u32 %s120, 1
          %s389 = scalar_lea.vmem [#allocation7], %s388
          %390 = dma.done %s387, 16
        $region56: #{tpu_custom_call.1} parent=51 // pred_fallthru
          _
      $region52: #{tpu_custom_call.1} parent=5 // pred_fallthru
        _
    $region6: #{tpu_custom_call.1} parent=1 // loop_footer
      %s21 = sadd.s32 1, %s17
    $region7: #{tpu_custom_call.1} parent=1 // loop_footer_branch
      %16 = sbr.rel target = $region3
    $region8: #{tpu_custom_call.1} parent=1 // loop_exit
      _
    %391 = vsyncpa [#allocation3], 1
    %s392 = scalar_lea.sflag [#allocation3], 1
    %393 = vsyncpa %s392, 1
    %394 = vsyncpa [#allocation6], 1
    %395 = vsyncpa [#allocation4], 1
    %s396 = scalar_lea.sflag [#allocation4], 1
    %397 = vsyncpa %s396, 1

</llo_original>
